<compile_context>
chip_gen: v7x
topology: tpu7x:2x2x1
jax: 0.10.0
libtpu: 0.0.40
codegen_flags: <defaults>
</compile_context>

<pallas_src>
import functools

import jax
import jax.numpy as jnp
from jax import lax
from jax.experimental import pallas as pl
from jax.experimental.pallas import tpu as pltpu


_MASK_VAL = -1e30          # finite "-inf": masked lanes vanish from max/exp without NaN/inf
_SUBLANE_MIN = {4: 8, 2: 16, 1: 32}   # minimum sublane tile per element size


# ---------------------------------------------------------------------------
# Tiling / VMEM sizing
# ---------------------------------------------------------------------------
def _vmem_capacity_bytes() -> int:
    try:
        return int(pltpu.get_tpu_info().vmem_capacity_bytes)
    except Exception:
        return 64 * 1024 * 1024   # conservative fallback (v7x per-TensorCore VMEM)


def _pick_tiling(n: int, c: int, x_dtype, t_dtype, symmetric: bool):
    bx = jnp.dtype(x_dtype).itemsize
    bt = jnp.dtype(t_dtype).itemsize
    sub_min = max(_SUBLANE_MIN.get(bx, 8), _SUBLANE_MIN.get(bt, 8))

    cap = _vmem_capacity_bytes()
    vmem_limit = int(min(cap * 3 // 4, 96 * 2**20))   # leave headroom below capacity
    tile_budget = vmem_limit // 2                      # resident tile-data budget

    # Bytes per element: 2x double-buffered inputs + f32 working temps (masked copies,
    # exp, products; symmetric adds a second logsumexp pass over the same tiles).
    f32_temps = 6 if symmetric else 5
    per_elem = 2 * (bx + bt) + 4 * f32_temps
    n_stats = 7 if symmetric else 4
    per_row_fixed = n_stats * 128 * 4                  # (tile_n, 1) scratches pad to 128 lanes

    n_rounded = -(-n // sub_min) * sub_min
    c_rounded = -(-c // 128) * 128
    target_rows = 512                                  # measured ~85% HBM roofline at >=512 rows

    rows_full_c = tile_budget // (c_rounded * per_elem + per_row_fixed)
    if rows_full_c >= min(target_rows, n_rounded):
        # Whole class axis fits comfortably: single C pass, as many rows as allowed.
        tile_c = c
        tile_n = min(1024, n_rounded, rows_full_c)
    else:
        # Stream the class axis (online logsumexp) so the batch tile stays healthy.
        tile_n = min(target_rows, n_rounded)
        budget_per_row = max(per_elem * 128, tile_budget // max(tile_n, 1) - per_row_fixed)
        tile_c = max(128, (budget_per_row // per_elem) // 128 * 128)
        if tile_c >= c:
            tile_c = c
    tile_n = max(sub_min, (tile_n // sub_min) * sub_min)
    return tile_n, tile_c, vmem_limit


# ---------------------------------------------------------------------------
# Kernel factory (static config closed over: shapes, tiles, symmetric flag)
# ---------------------------------------------------------------------------
def _make_kernel(n: int, c: int, tile_n: int, tile_c: int, symmetric: bool):
    need_row_mask = (n % tile_n) != 0
    need_col_mask = (c % tile_c) != 0

    def kernel(x_ref, t_ref, out_ref, *scratch):
        if symmetric:
            m_x, l_x, s_t, s_tx, m_t, l_t, s_x = scratch
        else:
            m_x, l_x, s_t, s_tx = scratch
            m_t = l_t = s_x = None

        i = pl.program_id(0)          # batch-tile index  ("parallel")
        j = pl.program_id(1)          # class-chunk index ("arbitrary", innermost)

        @pl.when(j == 0)
        def _init():
            m_x[...] = jnp.full_like(m_x, _MASK_VAL)
            l_x[...] = jnp.zeros_like(l_x)
            s_t[...] = jnp.zeros_like(s_t)
            s_tx[...] = jnp.zeros_like(s_tx)
            if symmetric:
                m_t[...] = jnp.full_like(m_t, _MASK_VAL)
                l_t[...] = jnp.zeros_like(l_t)
                s_x[...] = jnp.zeros_like(s_x)

        x = x_ref[...].astype(jnp.float32)
        t = t_ref[...].astype(jnp.float32)

        # Validity mask for the ragged tail (no jnp.pad in the wrapper; OOB block rows /
        # columns contain garbage and must be excluded before max/exp and the sums).
        valid = None
        if need_row_mask:
            row_ids = i * tile_n + lax.broadcasted_iota(jnp.int32, (tile_n, 1), 0)
            valid = row_ids < n
        if need_col_mask:
            col_ids = j * tile_c + lax.broadcasted_iota(jnp.int32, (1, tile_c), 1)
            col_valid = col_ids < c
            valid = col_valid if valid is None else jnp.logical_and(valid, col_valid)

        if valid is not None:
            xm = jnp.where(valid, x, _MASK_VAL)   # logit view: masked lanes drop out of max/exp
            t0 = jnp.where(valid, t, 0.0)         # probability view: masked lanes contribute 0
        else:
            xm, t0 = x, t

        # Online logsumexp of the logits along the class (lane) axis.
        m_new = jnp.maximum(m_x[...], jnp.max(xm, axis=-1, keepdims=True))
        l_x[...] = l_x[...] * jnp.exp(m_x[...] - m_new) + jnp.sum(
            jnp.exp(xm - m_new), axis=-1, keepdims=True)
        m_x[...] = m_new

        # Running sum(t) and sum(t*x):  loss_row = sum(t) * LSE(x) - sum(t*x)
        # (never materializes the full (TN, C) log-prob tensor).
        s_t[...] = s_t[...] + jnp.sum(t0, axis=-1, keepdims=True)
        s_tx[...] = s_tx[...] + jnp.sum(t0 * xm, axis=-1, keepdims=True)

        if symmetric:
            tm = jnp.where(valid, t, _MASK_VAL) if valid is not None else t
            x0 = jnp.where(valid, x, 0.0) if valid is not None else x
            mt_new = jnp.maximum(m_t[...], jnp.max(tm, axis=-1, keepdims=True))
            l_t[...] = l_t[...] * jnp.exp(m_t[...] - mt_new) + jnp.sum(
                jnp.exp(tm - mt_new), axis=-1, keepdims=True)
            m_t[...] = mt_new
            s_x[...] = s_x[...] + jnp.sum(x0, axis=-1, keepdims=True)

        @pl.when(j == pl.num_programs(1) - 1)
        def _finalize():
            lse_x = m_x[...] + jnp.log(l_x[...])
            row_loss = s_t[...] * lse_x - s_tx[...]
            if symmetric:
                lse_t = m_t[...] + jnp.log(l_t[...])
                row_loss = 0.5 * (row_loss + s_x[...] * lse_t - s_tx[...])
            if need_row_mask:
                rows = i * tile_n + lax.broadcasted_iota(jnp.int32, (tile_n, 1), 0)
                row_loss = jnp.where(rows < n, row_loss, 0.0)
            out_ref[...] = jnp.full(out_ref.shape, jnp.sum(row_loss), dtype=jnp.float32)

    return kernel


# ---------------------------------------------------------------------------
# Pallas wrapper
# ---------------------------------------------------------------------------
def _ce_pallas(logits: jax.Array, targets: jax.Array, *, symmetric: bool = False,
               tile_n: int | None = None, tile_c: int | None = None) -> jax.Array:
    """Mean soft-target cross entropy over the batch (optionally symmetric, fused)."""
    assert logits.shape == targets.shape and logits.ndim == 2, \
        "expects (N, C) logits with probability targets of the same shape"
    n, c = logits.shape
    auto_tn, auto_tc, vmem_limit = _pick_tiling(n, c, logits.dtype, targets.dtype, symmetric)
    tile_n = auto_tn if tile_n is None else tile_n
    tile_c = auto_tc if tile_c is None else tile_c

    num_n = pl.cdiv(n, tile_n)
    num_c = pl.cdiv(c, tile_c)

    kernel = _make_kernel(n, c, tile_n, tile_c, symmetric)
    n_stats = 7 if symmetric else 4
    scratch_shapes = [pltpu.VMEM((tile_n, 1), jnp.float32) for _ in range(n_stats)]

    bx = jnp.dtype(logits.dtype).itemsize
    bt = jnp.dtype(targets.dtype).itemsize
    sym = 2 if symmetric else 1
    cost = pl.CostEstimate(
        flops=sym * 8 * n * c,
        transcendentals=sym * (n * c + n),
        bytes_accessed=n * c * (bx + bt) + num_n * 8 * 128 * 4,
    )

    partials = pl.pallas_call(
        kernel,
        out_shape=jax.ShapeDtypeStruct((num_n, 8, 128), jnp.float32),
        grid_spec=pltpu.PrefetchScalarGridSpec(
            num_scalar_prefetch=0,
            grid=(num_n, num_c),
            in_specs=[
                pl.BlockSpec((tile_n, tile_c), lambda i, j: (i, j)),
                pl.BlockSpec((tile_n, tile_c), lambda i, j: (i, j)),
            ],
            out_specs=pl.BlockSpec((1, 8, 128), lambda i, j: (i, 0, 0)),
            scratch_shapes=scratch_shapes,
        ),
        compiler_params=pltpu.CompilerParams(
            dimension_semantics=("parallel", "arbitrary"),   # batch tiles split across TCs
            vmem_limit_bytes=vmem_limit,
        ),
        cost_estimate=cost,
    )(logits, targets)

    # Tiny final reduction + mean (true batch size; tail rows contribute exactly 0).
    return jnp.sum(partials[:, 0, 0]) / jnp.float32(n)


def cross_entropy_loss(
    inputs: jax.Array,
    targets: jax.Array,
    *,
    symmetric: bool = False,
    detach_targets: bool = False,
    tile_n: int | None = None,
    tile_c: int | None = None,
) -> jax.Array:
    """JAX/Pallas equivalent of the PyTorch CrossEntropyLoss module's forward."""
    targets_ = lax.stop_gradient(targets) if detach_targets else targets
    if symmetric:
        # Fused: one HBM pass computes both CE(inputs, targets) and CE(targets, inputs).
        # Forward values are identical to two separate passes; detach only affects grads.
        # TODO(synk): add a custom_vjp if per-direction detach is needed in backward.
        return _ce_pallas(inputs, targets_, symmetric=True, tile_n=tile_n, tile_c=tile_c)
    return _ce_pallas(inputs, targets_, symmetric=False, tile_n=tile_n, tile_c=tile_c)


# ---------------------------------------------------------------------------
# Pure-JAX reference + self-test
# ---------------------------------------------------------------------------
def _reference_ce(logits, targets):
    """nn.CrossEntropyLoss with probability targets, mean reduction."""
    logp = jax.nn.log_softmax(logits.astype(jnp.float32), axis=-1)
    return jnp.mean(-jnp.sum(targets.astype(jnp.float32) * logp, axis=-1))


if __name__ == "__main__":
    key = jax.random.PRNGKey(0)
    k1, k2, k3, k4, k5, k6 = jax.random.split(key, 6)

    # Case 1: small f32 example — batch N=8, classes C=32, probability targets.
    N, C = 8, 32
    logits = jax.random.normal(k1, (N, C), dtype=jnp.float32)
    targets = jax.nn.softmax(jax.random.normal(k2, (N, C), dtype=jnp.float32), axis=-1)

    loss = jax.block_until_ready(cross_entropy_loss(logits, targets))
    loss_sym = jax.block_until_ready(
        cross_entropy_loss(logits, targets, symmetric=True, detach_targets=True))

    ref = _reference_ce(logits, targets)
    ref_sym = (_reference_ce(logits, targets) + _reference_ce(targets, logits)) / 2.0
    assert jnp.allclose(loss, ref, atol=1e-5, rtol=1e-5), (loss, ref)
    assert jnp.allclose(loss_sym, ref_sym, atol=1e-5, rtol=1e-5), (loss_sym, ref_sym)

    # Case 2: bf16 transport + ragged batch (exercises the in-kernel row mask, no jnp.pad).
    N2, C2 = 50, 256
    logits2 = jax.random.normal(k3, (N2, C2), dtype=jnp.float32).astype(jnp.bfloat16)
    targets2 = jax.nn.softmax(jax.random.normal(k4, (N2, C2)), axis=-1).astype(jnp.bfloat16)

    loss2 = jax.block_until_ready(cross_entropy_loss(logits2, targets2))
    ref2 = _reference_ce(logits2, targets2)
    assert jnp.allclose(loss2, ref2, atol=1e-4, rtol=1e-4), (loss2, ref2)

    # Case 3: force the streaming-C (online logsumexp) path + both row and column masks
    # + fused symmetric mode, with ragged N=20, C=200 and tiny tiles (tile_n=16, tile_c=128).
    N3, C3 = 20, 200
    logits3 = jax.random.normal(k5, (N3, C3), dtype=jnp.float32)
    targets3 = jax.nn.softmax(jax.random.normal(k6, (N3, C3), dtype=jnp.float32), axis=-1)

    loss3 = jax.block_until_ready(
        cross_entropy_loss(logits3, targets3, symmetric=True, tile_n=16, tile_c=128))
    ref3 = (_reference_ce(logits3, targets3) + _reference_ce(targets3, logits3)) / 2.0
    assert jnp.allclose(loss3, ref3, atol=1e-5, rtol=1e-5), (loss3, ref3)

    loss3b = jax.block_until_ready(
        cross_entropy_loss(logits3, targets3, tile_n=16, tile_c=128))
    ref3b = _reference_ce(logits3, targets3)
    assert jnp.allclose(loss3b, ref3b, atol=1e-5, rtol=1e-5), (loss3b, ref3b)

    print("KERNEL_OK")
</pallas_src>

<mosaic_0001>
module attributes {stable_mosaic.version = 11 : i64} {
  func.func @kernel(%arg0: i32, %arg1: i32, %arg2: memref<8x32xf32, #tpu.memory_space<vmem>>, %arg3: memref<8x32xf32, #tpu.memory_space<vmem>>, %arg4: memref<1x8x128xf32, #tpu.memory_space<vmem>>, %arg5: memref<8x1xf32, #tpu.memory_space<vmem>>, %arg6: memref<8x1xf32, #tpu.memory_space<vmem>>, %arg7: memref<8x1xf32, #tpu.memory_space<vmem>>, %arg8: memref<8x1xf32, #tpu.memory_space<vmem>>) attributes {dimension_semantics = [#tpu.dimension_semantics<parallel>, #tpu.dimension_semantics<arbitrary>], iteration_bounds = array<i64: 1, 1>, scalar_prefetch = 0 : i64, scratch_operands = 4 : i64, tpu.core_type = #tpu.core_type<tc>, window_params = [{transform_indices = @transform_0, window_bounds = array<i64: 8, 32>}, {transform_indices = @transform_1, window_bounds = array<i64: 8, 32>}, {transform_indices = @transform_2, window_bounds = array<i64: 1, 8, 128>}]} {
    %c0_i32 = arith.constant 0 : i32
    %0 = arith.cmpi eq, %arg1, %c0_i32 : i32
    %1 = arith.extui %0 : i1 to i32
    %c0_i32_0 = arith.constant 0 : i32
    %2 = arith.cmpi ne, %1, %c0_i32_0 : i32
    scf.if %2 {
      %cst_27 = arith.constant -1.000000e+30 : f32
      %36 = vector.broadcast %cst_27 : f32 to vector<8x1xf32>
      %c0_28 = arith.constant 0 : index
      %c0_29 = arith.constant 0 : index
      %37 = vector.load %arg5[%c0_28, %c0_29] : memref<8x1xf32, #tpu.memory_space<vmem>>, vector<8x1xf32>
      tpu.vector_store %arg5[%c0_28, %c0_29], %36 {strides = array<i32>} : memref<8x1xf32, #tpu.memory_space<vmem>>, vector<8x1xf32>,
      %cst_30 = arith.constant 0.000000e+00 : f32
      %38 = vector.broadcast %cst_30 : f32 to vector<8x1xf32>
      %c0_31 = arith.constant 0 : index
      %c0_32 = arith.constant 0 : index
      %39 = vector.load %arg6[%c0_31, %c0_32] : memref<8x1xf32, #tpu.memory_space<vmem>>, vector<8x1xf32>
      tpu.vector_store %arg6[%c0_31, %c0_32], %38 {strides = array<i32>} : memref<8x1xf32, #tpu.memory_space<vmem>>, vector<8x1xf32>,
      %cst_33 = arith.constant 0.000000e+00 : f32
      %40 = vector.broadcast %cst_33 : f32 to vector<8x1xf32>
      %c0_34 = arith.constant 0 : index
      %c0_35 = arith.constant 0 : index
      %41 = vector.load %arg7[%c0_34, %c0_35] : memref<8x1xf32, #tpu.memory_space<vmem>>, vector<8x1xf32>
      tpu.vector_store %arg7[%c0_34, %c0_35], %40 {strides = array<i32>} : memref<8x1xf32, #tpu.memory_space<vmem>>, vector<8x1xf32>,
      %cst_36 = arith.constant 0.000000e+00 : f32
      %42 = vector.broadcast %cst_36 : f32 to vector<8x1xf32>
      %c0_37 = arith.constant 0 : index
      %c0_38 = arith.constant 0 : index
      %43 = vector.load %arg8[%c0_37, %c0_38] : memref<8x1xf32, #tpu.memory_space<vmem>>, vector<8x1xf32>
      tpu.vector_store %arg8[%c0_37, %c0_38], %42 {strides = array<i32>} : memref<8x1xf32, #tpu.memory_space<vmem>>, vector<8x1xf32>,
    } else {
    }
    %c0 = arith.constant 0 : index
    %c0_1 = arith.constant 0 : index
    %3 = vector.load %arg2[%c0, %c0_1] : memref<8x32xf32, #tpu.memory_space<vmem>>, vector<8x32xf32>
    %c0_2 = arith.constant 0 : index
    %c0_3 = arith.constant 0 : index
    %4 = vector.load %arg3[%c0_2, %c0_3] : memref<8x32xf32, #tpu.memory_space<vmem>>, vector<8x32xf32>
    %c0_4 = arith.constant 0 : index
    %c0_5 = arith.constant 0 : index
    %5 = vector.load %arg5[%c0_4, %c0_5] : memref<8x1xf32, #tpu.memory_space<vmem>>, vector<8x1xf32>
    %cst = arith.constant dense<0xFF800000> : vector<8xf32>
    %6 = vector.multi_reduction <maximumf>, %3, %cst [1] : vector<8x32xf32> to vector<8xf32>
    %7 = vector.shape_cast %6 : vector<8xf32> to vector<8x1xf32>
    %8 = arith.maximumf %5, %7 : vector<8x1xf32>
    %c0_6 = arith.constant 0 : index
    %c0_7 = arith.constant 0 : index
    %9 = vector.load %arg6[%c0_6, %c0_7] : memref<8x1xf32, #tpu.memory_space<vmem>>, vector<8x1xf32>
    %c0_8 = arith.constant 0 : index
    %c0_9 = arith.constant 0 : index
    %10 = vector.load %arg5[%c0_8, %c0_9] : memref<8x1xf32, #tpu.memory_space<vmem>>, vector<8x1xf32>
    %11 = arith.subf %10, %8 : vector<8x1xf32>
    %12 = math.exp %11 : vector<8x1xf32>
    %13 = arith.mulf %9, %12 : vector<8x1xf32>
    %14 = vector.broadcast %8 : vector<8x1xf32> to vector<8x32xf32>
    %15 = arith.subf %3, %14 : vector<8x32xf32>
    %16 = math.exp %15 : vector<8x32xf32>
    %cst_10 = arith.constant dense<0.000000e+00> : vector<8xf32>
    %17 = vector.multi_reduction <add>, %16, %cst_10 [1] : vector<8x32xf32> to vector<8xf32>
    %18 = vector.shape_cast %17 : vector<8xf32> to vector<8x1xf32>
    %19 = arith.addf %13, %18 : vector<8x1xf32>
    %c0_11 = arith.constant 0 : index
    %c0_12 = arith.constant 0 : index
    %20 = vector.load %arg6[%c0_11, %c0_12] : memref<8x1xf32, #tpu.memory_space<vmem>>, vector<8x1xf32>
    tpu.vector_store %arg6[%c0_11, %c0_12], %19 {strides = array<i32>} : memref<8x1xf32, #tpu.memory_space<vmem>>, vector<8x1xf32>,
    %c0_13 = arith.constant 0 : index
    %c0_14 = arith.constant 0 : index
    %21 = vector.load %arg5[%c0_13, %c0_14] : memref<8x1xf32, #tpu.memory_space<vmem>>, vector<8x1xf32>
    tpu.vector_store %arg5[%c0_13, %c0_14], %8 {strides = array<i32>} : memref<8x1xf32, #tpu.memory_space<vmem>>, vector<8x1xf32>,
    %c0_15 = arith.constant 0 : index
    %c0_16 = arith.constant 0 : index
    %22 = vector.load %arg7[%c0_15, %c0_16] : memref<8x1xf32, #tpu.memory_space<vmem>>, vector<8x1xf32>
    %cst_17 = arith.constant dense<0.000000e+00> : vector<8xf32>
    %23 = vector.multi_reduction <add>, %4, %cst_17 [1] : vector<8x32xf32> to vector<8xf32>
    %24 = vector.shape_cast %23 : vector<8xf32> to vector<8x1xf32>
    %25 = arith.addf %22, %24 : vector<8x1xf32>
    %c0_18 = arith.constant 0 : index
    %c0_19 = arith.constant 0 : index
    %26 = vector.load %arg7[%c0_18, %c0_19] : memref<8x1xf32, #tpu.memory_space<vmem>>, vector<8x1xf32>
    tpu.vector_store %arg7[%c0_18, %c0_19], %25 {strides = array<i32>} : memref<8x1xf32, #tpu.memory_space<vmem>>, vector<8x1xf32>,
    %c0_20 = arith.constant 0 : index
    %c0_21 = arith.constant 0 : index
    %27 = vector.load %arg8[%c0_20, %c0_21] : memref<8x1xf32, #tpu.memory_space<vmem>>, vector<8x1xf32>
    %28 = arith.mulf %4, %3 : vector<8x32xf32>
    %cst_22 = arith.constant dense<0.000000e+00> : vector<8xf32>
    %29 = vector.multi_reduction <add>, %28, %cst_22 [1] : vector<8x32xf32> to vector<8xf32>
    %30 = vector.shape_cast %29 : vector<8xf32> to vector<8x1xf32>
    %31 = arith.addf %27, %30 : vector<8x1xf32>
    %c0_23 = arith.constant 0 : index
    %c0_24 = arith.constant 0 : index
    %32 = vector.load %arg8[%c0_23, %c0_24] : memref<8x1xf32, #tpu.memory_space<vmem>>, vector<8x1xf32>
    tpu.vector_store %arg8[%c0_23, %c0_24], %31 {strides = array<i32>} : memref<8x1xf32, #tpu.memory_space<vmem>>, vector<8x1xf32>,
    %c0_i32_25 = arith.constant 0 : i32
    %33 = arith.cmpi eq, %arg1, %c0_i32_25 : i32
    %34 = arith.extui %33 : i1 to i32
    %c0_i32_26 = arith.constant 0 : i32
    %35 = arith.cmpi ne, %34, %c0_i32_26 : i32
    scf.if %35 {
      %c0_27 = arith.constant 0 : index
      %c0_28 = arith.constant 0 : index
      %36 = vector.load %arg5[%c0_27, %c0_28] : memref<8x1xf32, #tpu.memory_space<vmem>>, vector<8x1xf32>
      %c0_29 = arith.constant 0 : index
      %c0_30 = arith.constant 0 : index
      %37 = vector.load %arg6[%c0_29, %c0_30] : memref<8x1xf32, #tpu.memory_space<vmem>>, vector<8x1xf32>
      %38 = math.log %37 : vector<8x1xf32>
      %39 = arith.addf %36, %38 : vector<8x1xf32>
      %c0_31 = arith.constant 0 : index
      %c0_32 = arith.constant 0 : index
      %40 = vector.load %arg7[%c0_31, %c0_32] : memref<8x1xf32, #tpu.memory_space<vmem>>, vector<8x1xf32>
      %41 = arith.mulf %40, %39 : vector<8x1xf32>
      %c0_33 = arith.constant 0 : index
      %c0_34 = arith.constant 0 : index
      %42 = vector.load %arg8[%c0_33, %c0_34] : memref<8x1xf32, #tpu.memory_space<vmem>>, vector<8x1xf32>
      %43 = arith.subf %41, %42 : vector<8x1xf32>
      %44 = vector.shape_cast %43 : vector<8x1xf32> to vector<1x8x1xf32>
      %cst_35 = arith.constant dense<0.000000e+00> : vector<1xf32>
      %45 = vector.multi_reduction <add>, %44, %cst_35 [1, 2] : vector<1x8x1xf32> to vector<1xf32>
      %46 = vector.shape_cast %45 : vector<1xf32> to vector<1x1x1xf32>
      %47 = vector.extract %46[0, 0, 0] : f32 from vector<1x1x1xf32>
      %48 = vector.broadcast %47 : f32 to vector<1x8x128xf32>
      %c0_36 = arith.constant 0 : index
      %c0_37 = arith.constant 0 : index
      %c0_38 = arith.constant 0 : index
      %49 = vector.load %arg4[%c0_36, %c0_37, %c0_38] : memref<1x8x128xf32, #tpu.memory_space<vmem>>, vector<1x8x128xf32>
      tpu.vector_store %arg4[%c0_36, %c0_37, %c0_38], %48 {strides = array<i32>} : memref<1x8x128xf32, #tpu.memory_space<vmem>>, vector<1x8x128xf32>,
    } else {
    }
    return
  }
  func.func @transform_0(%arg0: i32, %arg1: i32) -> (i32, i32) {
    %c0_i32 = arith.constant 0 : i32
    return %arg0, %arg1 : i32, i32
  }
  func.func @transform_1(%arg0: i32, %arg1: i32) -> (i32, i32) {
    %c0_i32 = arith.constant 0 : i32
    return %arg0, %arg1 : i32, i32
  }
  func.func @transform_2(%arg0: i32, %arg1: i32) -> (i32, i32, i32) {
    %c0_i32 = arith.constant 0 : i32
    %c0_i32_0 = arith.constant 0 : i32
    %c0_i32_1 = arith.constant 0 : i32
    return %arg0, %c0_i32, %c0_i32_0 : i32, i32, i32
  }
}

</mosaic_0001>

<llo_original>
// kernel: tpu_custom_call.1
$region0: #{tpu_custom_call.1}
  #allocation0 [shape = 'u32[]', space=smem, size = 0x4, offset = 0x4, fixed_abs, tag = 'smem constant byte address 0x4 - core index']
  #allocation1 [shape = 'u32[144,128]{1,0:T(1,128)}', space=vmem, size = 0x12000, scoped, tag = 'internal scratch']
  #allocation2 [shape = 'f32[8,1]{1,0:T(8,128)}', space=vmem, size = 0x1000, scoped, tag = 'scratch operand']
  #allocation3 [shape = 'f32[8,1]{1,0:T(8,128)}', space=vmem, size = 0x1000, scoped, tag = 'scratch operand']
  #allocation4 [shape = 'f32[8,1]{1,0:T(8,128)}', space=vmem, size = 0x1000, scoped, tag = 'scratch operand']
  #allocation5 [shape = 'f32[8,1]{1,0:T(8,128)}', space=vmem, size = 0x1000, scoped, tag = 'scratch operand']
  %s0 = inlined_call_operand.hbm [shape: f32[8,32], index: 0, kind: input, shape index: {}]
  %s1 = inlined_call_operand.hbm [shape: f32[8,32], index: 1, kind: input, shape index: {}]
  %s2 = inlined_call_operand.hbm [shape: f32[1,8,128], index: 2, kind: output, shape index: {}]
  %s3 = sld [smem:[#allocation0]]
  $region34: #{tpu_custom_call.1} parent=0
    _
  %s5 = ssub.s32 1, %s3
  %s6 = scalar_select 0, %s5, %s3
  $region1: #{tpu_custom_call.1} parent=0
    #allocation6 [shape = 'u8[4096]{0}', space=vmem, size = 0x1000, scoped, tag = 'input window, operand 0, single buffered']
    #allocation7 [shape = 's32[1]{0}', space=sflag, size = 0x4, scoped, tag = 'scoped memory for tpu_custom_call.1']
    #allocation8 [shape = 's32[1]{0}', space=sflag, size = 0x4, scoped, tag = 'scoped memory for tpu_custom_call.1']
    #allocation9 [shape = 'u8[4096]{0}', space=vmem, size = 0x1000, scoped, tag = 'input window, operand 1, single buffered']
    #allocation10 [shape = 's32[1]{0}', space=sflag, size = 0x4, scoped, tag = 'scoped memory for tpu_custom_call.1']
    #allocation11 [shape = 'u8[4096]{0}', space=vmem, size = 0x1000, scoped, tag = 'output window, operand 0, single buffered']
    %7 = vsyncpa [#allocation7], 0
    %8 = vsyncpa [#allocation10], 0
    %9 = vsyncpa [#allocation8], 0
    // Predicated region
    $region2: #{tpu_custom_call.1} parent=1 // pred_check
      _
    $region3: #{tpu_custom_call.1} parent=1 // pred_check_branch
      %11 = sbr.rel (0) target = $region5
    $region4: #{tpu_custom_call.1} parent=1 // pred_region
      %s13 = ssub.s32 128, 128
      %14 = vsyncadd [#allocation7], %s13
      %s16 = sshll.u32 [#allocation6], 4
      %s17 = int_to_ptr.vmem [resolvable:$true] %s16
      %19 = dma.hbm_to_vmem [thread:$0]  %s0, 128, %s17, [#allocation7]
    $region5: #{tpu_custom_call.1} parent=1 // pred_fallthru
      _
    // Predicated region
    $region6: #{tpu_custom_call.1} parent=1 // pred_check
      _
    $region7: #{tpu_custom_call.1} parent=1 // pred_check_branch
      %21 = sbr.rel (0) target = $region9
    $region8: #{tpu_custom_call.1} parent=1 // pred_region
      %s23 = ssub.s32 128, 128
      %24 = vsyncadd [#allocation10], %s23
      %s26 = sshll.u32 [#allocation9], 4
      %s27 = int_to_ptr.vmem [resolvable:$true] %s26
      %29 = dma.hbm_to_vmem [thread:$0]  %s1, 128, %s27, [#allocation10]
    $region9: #{tpu_custom_call.1} parent=1 // pred_fallthru
      _
    // Predicated region
    $region10: #{tpu_custom_call.1} parent=1 // pred_check
      _
    $region11: #{tpu_custom_call.1} parent=1 // pred_check_branch
      %31 = sbr.rel (0) target = $region13
    $region12: #{tpu_custom_call.1} parent=1 // pred_region
      %32 = dma.done [#allocation7], 128
    $region13: #{tpu_custom_call.1} parent=1 // pred_fallthru
      _
    // Predicated region
    $region14: #{tpu_custom_call.1} parent=1 // pred_check
      _
    $region15: #{tpu_custom_call.1} parent=1 // pred_check_branch
      %34 = sbr.rel (0) target = $region17
    $region16: #{tpu_custom_call.1} parent=1 // pred_region
      %35 = dma.done [#allocation10], 128
    $region17: #{tpu_custom_call.1} parent=1 // pred_fallthru
      _
    %p36 = scmp.eq.s32.totalorder 0, 0
    // Predicated region
    $region18: #{tpu_custom_call.1} parent=1 // pred_check
      %p37 = pneg %p36
    $region19: #{tpu_custom_call.1} parent=1 // pred_check_branch
      %39 = sbr.rel (%p37) target = $region21
    $region20: #{tpu_custom_call.1} parent=1 // pred_region
      %vm40 = vcmask 7168
      %41 = vst.msk [vmem:[#allocation2] sm:$0xff] %vm40, -1e+30
      %42 = vst.msk [vmem:[#allocation3] sm:$0xff] %vm40, 0.0
      %43 = vst.msk [vmem:[#allocation4] sm:$0xff] %vm40, 0.0
      %44 = vst.msk [vmem:[#allocation5] sm:$0xff] %vm40, 0.0
    $region21: #{tpu_custom_call.1} parent=1 // pred_fallthru
      _
    %v45 = vld [vmem:[#allocation6] sm:$0xff]
    %v46 = vld [vmem:[#allocation9] sm:$0xff]
    %v47 = vld [vmem:[#allocation2] sm:$0xff]
    %vm48 = vcmask 261120
    %v49 = vsel %vm48, %v45, -inf
    %50 = vmax.xlane.f32.xlu0 %v49
    %v51 = vpop.xlane.xlu0 %50
    %v52 = vmax.f32 %v47, %v51
    %v53 = vld [vmem:[#allocation3] sm:$0xff]
    %v54 = vsub.f32 %v47, %v52
    %v55 = vmul.f32 %v54, 1.442695
    %v56 = vpow.pop %v55
    %v57 = vmul.f32 %v53, %v56
    %59 = vset.pattern.permute.xlu0 0
    %60 = vperm.xlu0 %59, %v52
    %v61 = vpop.permute.xlu0 %60
    %v63 = vsub.f32 %v45, %v61
    %v64 = vmul.f32 %v63, 1.442695
    %v65 = vpow.pop %v64
    %v66 = vsel %vm48, %v65, 0.0
    %67 = vadd.xlane.f32.xlu0 %v66
    %v68 = vpop.xlane.xlu0 %67
    %v69 = vadd.f32 %v57, %v68
    %vm70 = vcmask 7168
    %71 = vst.msk [vmem:[#allocation3] sm:$0xff] %vm70, %v69
    %72 = vst.msk [vmem:[#allocation2] sm:$0xff] %vm70, %v52
    %v73 = vld [vmem:[#allocation4] sm:$0xff]
    %v74 = vsel %vm48, %v46, 0.0
    %75 = vadd.xlane.f32.xlu0 %v74
    %v76 = vpop.xlane.xlu0 %75
    %v77 = vadd.f32 %v73, %v76
    %78 = vst.msk [vmem:[#allocation4] sm:$0xff] %vm70, %v77
    %v79 = vld [vmem:[#allocation5] sm:$0xff]
    %v80 = vmul.f32 %v46, %v45
    %v81 = vsel %vm48, %v80, 0.0
    %82 = vadd.xlane.f32.xlu0 %v81
    %v83 = vpop.xlane.xlu0 %82
    %v84 = vadd.f32 %v79, %v83
    %85 = vst.msk [vmem:[#allocation5] sm:$0xff] %vm70, %v84
    // Predicated region
    $region22: #{tpu_custom_call.1} parent=1 // pred_check
      %p86 = pneg %p36
    $region23: #{tpu_custom_call.1} parent=1 // pred_check_branch
      %88 = sbr.rel (%p86) target = $region25
    $region24: #{tpu_custom_call.1} parent=1 // pred_region
      %v89 = vld [vmem:[#allocation2] sm:$0xff]
      %v90 = vld [vmem:[#allocation3] sm:$0xff]
      %v91 = vlog2.pop %v90
      %v92 = vmul.f32 %v91, 0.6931472
      %v93 = vadd.f32 %v89, %v92
      %v94 = vld [vmem:[#allocation4] sm:$0xff]
      %v95 = vmul.f32 %v94, %v93
      %v96 = vld [vmem:[#allocation5] sm:$0xff]
      %v97 = vsub.f32 %v95, %v96
      %v98 = vsel %vm70, %v97, 0.0
      %99 = vadd.xlane.f32.xlu0 %v98
      %v100 = vpop.xlane.xlu0 %99
      %v101 = vrot.slane %v100, 4
      %v102 = vadd.f32 %v100, %v101
      %v103 = vrot.slane %v102, 2
      %v104 = vadd.f32 %v102, %v103
      %v105 = vrot.slane %v104, 1
      %v106 = vadd.f32 %v104, %v105
      %s107 = vtos %v106
      %v108 = vstv %s107
      %109 = vst [vmem:[#allocation11] sm:$0xff] %v108
    $region25: #{tpu_custom_call.1} parent=1 // pred_fallthru
      _
    // Predicated region
    $region26: #{tpu_custom_call.1} parent=1 // pred_check
      _
    $region27: #{tpu_custom_call.1} parent=1 // pred_check_branch
      %111 = sbr.rel (0) target = $region29
    $region28: #{tpu_custom_call.1} parent=1 // pred_region
      %s113 = ssub.s32 128, 128
      %114 = vsyncadd [#allocation8], %s113
      %s116 = sshll.u32 [#allocation11], 4
      %s117 = int_to_ptr.vmem [resolvable:$true] %s116
      %119 = dma.vmem_to_hbm [thread:$0]  %s117, 128, %s2, [#allocation8]
    $region29: #{tpu_custom_call.1} parent=1 // pred_fallthru
      _
    // Predicated region
    $region30: #{tpu_custom_call.1} parent=1 // pred_check
      _
    $region31: #{tpu_custom_call.1} parent=1 // pred_check_branch
      %121 = sbr.rel (0) target = $region33
    $region32: #{tpu_custom_call.1} parent=1 // pred_region
      %122 = dma.done [#allocation8], 128
    $region33: #{tpu_custom_call.1} parent=1 // pred_fallthru
      _
    %123 = vsyncpa [#allocation7], 1
    %124 = vsyncpa [#allocation10], 1
    %125 = vsyncpa [#allocation8], 1

</llo_original>
